<compile_context>
chip_gen: v5e
topology: v5e:2x2
jax: 0.10.0
libtpu: 0.0.40
codegen_flags: <defaults>
</compile_context>

<pallas_src>
import jax
import jax.numpy as jnp
from jax.experimental import pallas as pl
from jax.experimental.pallas import tpu as pltpu

BATCH = 2
LEN_Q = 8
LEN_K = 8
D_K = 32
D_V = 32


# ---------------------------------------------------------------------------
# Pallas kernels (single invocation, full arrays resident in VMEM)
# ---------------------------------------------------------------------------
def _softmax_pv(scores, v, out_ref, attn_ref):
    """scores: (B, Lq, Lk) scaled/masked logits; v: (B, Lk, Dv)."""
    m = jnp.max(scores, axis=-1, keepdims=True)
    e = jnp.exp(scores - m)
    s = jnp.sum(e, axis=-1, keepdims=True)
    p = e * pl.reciprocal(s, approx=False)        # softmax(dim=2), divide -> EUP
    # nn.Dropout(p=0.1) in eval mode is the identity.
    attn_ref[...] = p.astype(attn_ref.dtype)
    out_ref[...] = jnp.einsum(
        "bqk,bkd->bqd", p, v,
        preferred_element_type=jnp.float32).astype(out_ref.dtype)


def _attention_kernel(scale_ref, q_ref, k_ref, v_ref, out_ref, attn_ref):
    inv_t = scale_ref[0, 0]                       # SMEM scalar: 1/temperature
    scores = jnp.einsum(
        "bqd,bkd->bqk", q_ref[...], k_ref[...],
        preferred_element_type=jnp.float32) * inv_t
    _softmax_pv(scores, v_ref[...], out_ref, attn_ref)


def _attention_kernel_masked(scale_ref, q_ref, k_ref, v_ref, mask_ref,
                             out_ref, attn_ref):
    inv_t = scale_ref[0, 0]
    scores = jnp.einsum(
        "bqd,bkd->bqk", q_ref[...], k_ref[...],
        preferred_element_type=jnp.float32) * inv_t
    # masked_fill(mask, -inf); int8 mask broadcasts over the batch dim if (1,Lq,Lk).
    m = mask_ref[...].astype(jnp.int32)
    scores = jnp.where(m != 0, -jnp.inf, scores)
    _softmax_pv(scores, v_ref[...], out_ref, attn_ref)


# ---------------------------------------------------------------------------
# Wrapper
# ---------------------------------------------------------------------------
def scaled_dot_product_attention(q, k, v, temperature, mask=None):
    """Returns (output, attn) exactly like the PyTorch module's forward."""
    B, Lq, _ = q.shape
    _, Lk, _ = k.shape
    Dv = v.shape[-1]
    inv_t = jnp.asarray(1.0 / temperature, jnp.float32).reshape(1, 1)

    vmem = pltpu.MemorySpace.VMEM
    smem = pltpu.MemorySpace.SMEM

    in_specs = [
        pl.BlockSpec(memory_space=smem),          # 1/temperature scalar
        pl.BlockSpec(memory_space=vmem),          # q (B, Lq, Dk)
        pl.BlockSpec(memory_space=vmem),          # k (B, Lk, Dk)
        pl.BlockSpec(memory_space=vmem),          # v (B, Lk, Dv)
    ]
    args = [inv_t, q, k, v]
    kernel = _attention_kernel
    if mask is not None:
        kernel = _attention_kernel_masked
        in_specs.append(pl.BlockSpec(memory_space=vmem))
        # int8 mask: 1 byte/elem; a (1, Lq, Lk) mask is DMA'd once and broadcast
        # inside the kernel instead of being replicated per batch element.
        args.append(mask.astype(jnp.int8))

    out, attn = pl.pallas_call(
        kernel,
        out_shape=(
            jax.ShapeDtypeStruct((B, Lq, Dv), q.dtype),
            jax.ShapeDtypeStruct((B, Lq, Lk), jnp.float32),
        ),
        in_specs=in_specs,
        out_specs=(
            pl.BlockSpec(memory_space=vmem),
            pl.BlockSpec(memory_space=vmem),
        ),
    )(*args)
    return out, attn


# ---------------------------------------------------------------------------
# Pure-JAX reference (same math, no Pallas) for a sanity check
# ---------------------------------------------------------------------------
def _reference(q, k, v, temperature, mask=None):
    attn = jnp.einsum("bqd,bkd->bqk", q, k) / temperature
    if mask is not None:
        attn = jnp.where(mask, -jnp.inf, attn)
    attn = jax.nn.softmax(attn, axis=2)
    out = jnp.einsum("bqk,bkd->bqd", attn, v)
    return out, attn


if __name__ == "__main__":
    key = jax.random.PRNGKey(0)
    kq, kk, kv = jax.random.split(key, 3)
    q = jax.random.normal(kq, (BATCH, LEN_Q, D_K), jnp.float32)
    k = jax.random.normal(kk, (BATCH, LEN_K, D_K), jnp.float32)
    v = jax.random.normal(kv, (BATCH, LEN_K, D_V), jnp.float32)
    temperature = float(D_K) ** 0.5

    # Causal-style mask (no row fully masked). Batch-invariant (1, Lq, Lk) form
    # plus a broadcast per-batch (B, Lq, Lk) form.
    mask1 = (jnp.triu(jnp.ones((LEN_Q, LEN_K), jnp.int32), k=1) > 0)[None, :, :]
    maskB = jnp.broadcast_to(mask1, (BATCH, LEN_Q, LEN_K))

    fwd = jax.jit(scaled_dot_product_attention)

    # --- no mask ---
    out, attn = fwd(q, k, v, temperature)
    jax.block_until_ready((out, attn))
    ref_out, ref_attn = _reference(q, k, v, temperature)
    assert out.shape == (BATCH, LEN_Q, D_V), out.shape
    assert attn.shape == (BATCH, LEN_Q, LEN_K), attn.shape
    assert bool(jnp.all(jnp.isfinite(out))) and bool(jnp.all(jnp.isfinite(attn)))
    assert bool(jnp.allclose(out, ref_out, atol=1e-5, rtol=1e-5))
    assert bool(jnp.allclose(attn, ref_attn, atol=1e-5, rtol=1e-5))

    # --- batch-invariant mask (DMA'd once, broadcast in-kernel) ---
    out_m, attn_m = fwd(q, k, v, temperature, mask1)
    jax.block_until_ready((out_m, attn_m))
    ref_out_m, ref_attn_m = _reference(q, k, v, temperature, mask1)
    assert bool(jnp.allclose(out_m, ref_out_m, atol=1e-5, rtol=1e-5))
    assert bool(jnp.allclose(attn_m, ref_attn_m, atol=1e-5, rtol=1e-5))

    # --- per-batch mask ---
    out_b, attn_b = fwd(q, k, v, temperature, maskB)
    jax.block_until_ready((out_b, attn_b))
    ref_out_b, ref_attn_b = _reference(q, k, v, temperature, maskB)
    assert bool(jnp.allclose(out_b, ref_out_b, atol=1e-5, rtol=1e-5))
    assert bool(jnp.allclose(attn_b, ref_attn_b, atol=1e-5, rtol=1e-5))

    print("KERNEL_OK")
</pallas_src>

<mosaic_0001>
module attributes {stable_mosaic.version = 11 : i64} {
  func.func @_attention_kernel(%arg0: memref<1x1xf32, #tpu.memory_space<smem>>, %arg1: memref<2x8x32xf32, #tpu.memory_space<vmem>>, %arg2: memref<2x8x32xf32, #tpu.memory_space<vmem>>, %arg3: memref<2x8x32xf32, #tpu.memory_space<vmem>>, %arg4: memref<2x8x32xf32, #tpu.memory_space<vmem>>, %arg5: memref<2x8x8xf32, #tpu.memory_space<vmem>>) attributes {dimension_semantics = [], scalar_prefetch = 0 : i64, scratch_operands = 0 : i64, tpu.core_type = #tpu.core_type<tc>} {
    %c0 = arith.constant 0 : index
    %c0_0 = arith.constant 0 : index
    %0 = memref.load %arg0[%c0, %c0_0] : memref<1x1xf32, #tpu.memory_space<smem>>
    %c0_1 = arith.constant 0 : index
    %c0_2 = arith.constant 0 : index
    %c0_3 = arith.constant 0 : index
    %1 = vector.load %arg1[%c0_1, %c0_2, %c0_3] : memref<2x8x32xf32, #tpu.memory_space<vmem>>, vector<2x8x32xf32>
    %c0_4 = arith.constant 0 : index
    %c0_5 = arith.constant 0 : index
    %c0_6 = arith.constant 0 : index
    %2 = vector.load %arg2[%c0_4, %c0_5, %c0_6] : memref<2x8x32xf32, #tpu.memory_space<vmem>>, vector<2x8x32xf32>
    "tpu.trace_start"() <{level = 10 : i32, message = "bqd,bkd->bqk"}> : () -> ()
    %cst = arith.constant dense<0.000000e+00> : vector<2x8x8xf32>
    %3 = tpu.matmul %1, %2, %cst {dimension_numbers = #tpu.dot_dimension_numbers<[2], [2], [1], [1], [0, 0, 0, 1, 1, 1], [0], [0]>} : vector<2x8x32xf32>, vector<2x8x32xf32>, vector<2x8x8xf32> -> vector<2x8x8xf32>
    "tpu.trace_stop"() : () -> ()
    %4 = vector.broadcast %0 : f32 to vector<2x8x8xf32>
    %5 = arith.mulf %3, %4 : vector<2x8x8xf32>
    %c0_7 = arith.constant 0 : index
    %c0_8 = arith.constant 0 : index
    %c0_9 = arith.constant 0 : index
    %6 = vector.load %arg3[%c0_7, %c0_8, %c0_9] : memref<2x8x32xf32, #tpu.memory_space<vmem>>, vector<2x8x32xf32>
    %cst_10 = arith.constant dense<0xFF800000> : vector<2x8xf32>
    %7 = vector.multi_reduction <maximumf>, %5, %cst_10 [2] : vector<2x8x8xf32> to vector<2x8xf32>
    %8 = vector.shape_cast %7 : vector<2x8xf32> to vector<2x8x1xf32>
    %9 = vector.broadcast %8 : vector<2x8x1xf32> to vector<2x8x8xf32>
    %10 = arith.subf %5, %9 : vector<2x8x8xf32>
    %11 = math.exp %10 : vector<2x8x8xf32>
    %cst_11 = arith.constant dense<0.000000e+00> : vector<2x8xf32>
    %12 = vector.multi_reduction <add>, %11, %cst_11 [2] : vector<2x8x8xf32> to vector<2x8xf32>
    %13 = vector.shape_cast %12 : vector<2x8xf32> to vector<2x8x1xf32>
    %14 = tpu.reciprocal %13 : vector<2x8x1xf32> -> vector<2x8x1xf32>
    %15 = vector.broadcast %14 : vector<2x8x1xf32> to vector<2x8x8xf32>
    %16 = arith.mulf %11, %15 : vector<2x8x8xf32>
    %c0_12 = arith.constant 0 : index
    %c0_13 = arith.constant 0 : index
    %c0_14 = arith.constant 0 : index
    %17 = vector.load %arg5[%c0_12, %c0_13, %c0_14] : memref<2x8x8xf32, #tpu.memory_space<vmem>>, vector<2x8x8xf32>
    tpu.vector_store %arg5[%c0_12, %c0_13, %c0_14], %16 {strides = array<i32>} : memref<2x8x8xf32, #tpu.memory_space<vmem>>, vector<2x8x8xf32>,
    "tpu.trace_start"() <{level = 10 : i32, message = "bqk,bkd->bqd"}> : () -> ()
    %cst_15 = arith.constant dense<0.000000e+00> : vector<2x8x32xf32>
    %18 = tpu.matmul %16, %6, %cst_15 {dimension_numbers = #tpu.dot_dimension_numbers<[2], [1], [1], [2], [0, 0, 0, 1, 1, 2], [0], [0]>} : vector<2x8x8xf32>, vector<2x8x32xf32>, vector<2x8x32xf32> -> vector<2x8x32xf32>
    "tpu.trace_stop"() : () -> ()
    %c0_16 = arith.constant 0 : index
    %c0_17 = arith.constant 0 : index
    %c0_18 = arith.constant 0 : index
    %19 = vector.load %arg4[%c0_16, %c0_17, %c0_18] : memref<2x8x32xf32, #tpu.memory_space<vmem>>, vector<2x8x32xf32>
    tpu.vector_store %arg4[%c0_16, %c0_17, %c0_18], %18 {strides = array<i32>} : memref<2x8x32xf32, #tpu.memory_space<vmem>>, vector<2x8x32xf32>,
    return
  }
}

</mosaic_0001>

<llo_original>
// kernel: scaled_dot_product_attention.1
$region0: #{scaled_dot_product_attention.1}
  #allocation0 [shape = 'u32[]', space=smem, size = 0x4, offset = 0x4, fixed_abs, tag = 'smem constant byte address 0x4 - core index']
  #allocation1 [shape = 'u32[72,128]{1,0:T(1,128)}', space=vmem, size = 0x9000, scoped, tag = 'internal scratch']
  #allocation2 [shape = 'f32[1,1]{1,0:T(1,128)S(6)}', space=smem, size = 0x200, scoped, tag = 'scoped memory for scaled_dot_product_attention.1']
  %s0 = inlined_call_operand.<no memory space> [shape: f32[1,1], index: 0, kind: input, shape index: {}]
  %s1 = inlined_call_operand.hbm [shape: f32[2,8,32], index: 1, kind: input, shape index: {}]
  %s2 = inlined_call_operand.hbm [shape: f32[2,8,32], index: 2, kind: input, shape index: {}]
  %s3 = inlined_call_operand.hbm [shape: f32[2,8,32], index: 3, kind: input, shape index: {}]
  %s4 = inlined_call_operand.hbm [shape: f32[2,8,32], index: 4, kind: output, shape index: {0}]
  %s5 = inlined_call_operand.hbm [shape: f32[2,8,8], index: 5, kind: output, shape index: {1}]
  %6 = xla_tuple %s4, %s5
  %s7 = sld [smem:[#allocation0]]
  $region46: #{scaled_dot_product_attention.1} parent=0
    _
  %s9 = ssub.s32 1, %s7
  %s10 = scalar_select 0, %s9, %s7
  %11 = sst [smem:[#allocation2]] %s0
  $region1: #{scaled_dot_product_attention.1} parent=0
    #allocation3 [shape = 'u8[8192]{0}', space=vmem, size = 0x2000, scoped, tag = 'input window, operand 1, single buffered']
    #allocation4 [shape = 's32[1]{0}', space=sflag, size = 0x4, scoped, tag = 'scoped memory for scaled_dot_product_attention.1']
    #allocation5 [shape = 's32[1]{0}', space=sflag, size = 0x4, scoped, tag = 'scoped memory for scaled_dot_product_attention.1']
    #allocation6 [shape = 'u8[8192]{0}', space=vmem, size = 0x2000, scoped, tag = 'input window, operand 2, single buffered']
    #allocation7 [shape = 's32[1]{0}', space=sflag, size = 0x4, scoped, tag = 'scoped memory for scaled_dot_product_attention.1']
    #allocation8 [shape = 'u8[8192]{0}', space=vmem, size = 0x2000, scoped, tag = 'input window, operand 3, single buffered']
    #allocation9 [shape = 'u8[8192]{0}', space=vmem, size = 0x2000, scoped, tag = 'output window, operand 0, single buffered']
    #allocation10 [shape = 'u8[8192]{0}', space=vmem, size = 0x2000, scoped, tag = 'output window, operand 1, single buffered']
    #allocation11 [shape = 's32[1]{0}', space=sflag, size = 0x4, scoped, tag = 'scoped memory for scaled_dot_product_attention.1']
    %12 = vsyncpa [#allocation4], 0
    %13 = vsyncpa [#allocation7], 0
    %14 = vsyncpa [#allocation5], 0
    %15 = vsyncpa [#allocation11], 0
    // Predicated region
    $region2: #{scaled_dot_product_attention.1} parent=1 // pred_check
      _
    $region3: #{scaled_dot_product_attention.1} parent=1 // pred_check_branch
      %17 = sbr.rel (0) target = $region5
    $region4: #{scaled_dot_product_attention.1} parent=1 // pred_region
      _
    $region5: #{scaled_dot_product_attention.1} parent=1 // pred_fallthru
      _
    // Predicated region
    $region6: #{scaled_dot_product_attention.1} parent=1 // pred_check
      _
    $region7: #{scaled_dot_product_attention.1} parent=1 // pred_check_branch
      %19 = sbr.rel (0) target = $region9
    $region8: #{scaled_dot_product_attention.1} parent=1 // pred_region
      %21 = vsyncadd [#allocation4], 0
      %s22 = sshll.u32 %s1, 4
      %s23 = int_to_ptr.hbm [resolvable:$true] %s22
      %s24 = sshll.u32 [#allocation3], 4
      %s25 = int_to_ptr.vmem [resolvable:$true] %s24
      %30 = dma.hbm_to_vmem [thread:$0]  %s23, 256, %s25, [#allocation4], 128, 128, 8
    $region9: #{scaled_dot_product_attention.1} parent=1 // pred_fallthru
      _
    // Predicated region
    $region10: #{scaled_dot_product_attention.1} parent=1 // pred_check
      _
    $region11: #{scaled_dot_product_attention.1} parent=1 // pred_check_branch
      %32 = sbr.rel (0) target = $region13
    $region12: #{scaled_dot_product_attention.1} parent=1 // pred_region
      %34 = vsyncadd [#allocation7], 0
      %s35 = sshll.u32 %s2, 4
      %s36 = int_to_ptr.hbm [resolvable:$true] %s35
      %s37 = sshll.u32 [#allocation6], 4
      %s38 = int_to_ptr.vmem [resolvable:$true] %s37
      %43 = dma.hbm_to_vmem [thread:$0]  %s36, 256, %s38, [#allocation7], 128, 128, 8
    $region13: #{scaled_dot_product_attention.1} parent=1 // pred_fallthru
      _
    // Predicated region
    $region14: #{scaled_dot_product_attention.1} parent=1 // pred_check
      _
    $region15: #{scaled_dot_product_attention.1} parent=1 // pred_check_branch
      %45 = sbr.rel (0) target = $region17
    $region16: #{scaled_dot_product_attention.1} parent=1 // pred_region
      %47 = vsyncadd [#allocation7], 0
      %s48 = sshll.u32 %s3, 4
      %s49 = int_to_ptr.hbm [resolvable:$true] %s48
      %s50 = sshll.u32 [#allocation8], 4
      %s51 = int_to_ptr.vmem [resolvable:$true] %s50
      %56 = dma.hbm_to_vmem [thread:$0]  %s49, 256, %s51, [#allocation7], 128, 128, 8
    $region17: #{scaled_dot_product_attention.1} parent=1 // pred_fallthru
      _
    // Predicated region
    $region18: #{scaled_dot_product_attention.1} parent=1 // pred_check
      _
    $region19: #{scaled_dot_product_attention.1} parent=1 // pred_check_branch
      %58 = sbr.rel (0) target = $region21
    $region20: #{scaled_dot_product_attention.1} parent=1 // pred_region
      %60 = dma.done [#allocation4], 256
    $region21: #{scaled_dot_product_attention.1} parent=1 // pred_fallthru
      _
    // Predicated region
    $region22: #{scaled_dot_product_attention.1} parent=1 // pred_check
      _
    $region23: #{scaled_dot_product_attention.1} parent=1 // pred_check_branch
      %62 = sbr.rel (0) target = $region25
    $region24: #{scaled_dot_product_attention.1} parent=1 // pred_region
      %64 = dma.done [#allocation7], 256
    $region25: #{scaled_dot_product_attention.1} parent=1 // pred_fallthru
      _
    // Predicated region
    $region26: #{scaled_dot_product_attention.1} parent=1 // pred_check
      _
    $region27: #{scaled_dot_product_attention.1} parent=1 // pred_check_branch
      %66 = sbr.rel (0) target = $region29
    $region28: #{scaled_dot_product_attention.1} parent=1 // pred_region
      %68 = dma.done [#allocation7], 256
    $region29: #{scaled_dot_product_attention.1} parent=1 // pred_fallthru
      _
    %s69 = sld [smem:[#allocation2]]
    %v70 = vld [vmem:[#allocation3] sm:$0xff]
    %v71 = vld [vmem:[#allocation3 + $0x8] sm:$0xff]
    %v72 = vld [vmem:[#allocation6] sm:$0xff]
    %v73 = vld [vmem:[#allocation6 + $0x8] sm:$0xff]
    %vm74 = vcmask 261120
    %v76 = vsel %vm74, %v70, 0
    %v79 = vsel %vm74, %v72, 0
    %81 = vmatpush.xpose.msra.mxu0 0.0
    %82 = vmatpush.xpose.msra.mxu0 0.0
    %83 = vmatpush.xpose.msra.mxu0 0.0
    %84 = vmatpush.xpose.msra.mxu0 0.0
    %85 = vmatpush.xpose.msra.mxu0 0.0
    %86 = vmatpush.xpose.msra.mxu0 0.0
    %87 = vmatpush.xpose.msra.mxu0 0.0
    %88 = vmatpush.xpose.msra.mxu0 0.0
    %89 = vmatpush.xpose.msra.mxu0 0.0
    %90 = vmatpush.xpose.msra.mxu0 0.0
    %91 = vmatpush.xpose.msra.mxu0 0.0
    %92 = vmatpush.xpose.msra.mxu0 0.0
    %93 = vmatpush.xpose.msra.mxu0 0.0
    %94 = vmatpush.xpose.msra.mxu0 0.0
    %95 = vmatpush.xpose.msra.mxu0 0.0
    %96 = vmatpush.xpose.msra.mxu0 %v79
    %97 = vmatmul.f32.gmra.mxu0 %v76
    %v98 = vpop.f32.mrf.mxu0
    %v99 = vadd.f32 0.0, %v98
    %100 = vdwg.mxu0
    %v102 = vsel %vm74, %v71, 0
    %v105 = vsel %vm74, %v73, 0
    %107 = vmatpush.xpose.msra.mxu0 0.0
    %108 = vmatpush.xpose.msra.mxu0 0.0
    %109 = vmatpush.xpose.msra.mxu0 0.0
    %110 = vmatpush.xpose.msra.mxu0 0.0
    %111 = vmatpush.xpose.msra.mxu0 0.0
    %112 = vmatpush.xpose.msra.mxu0 0.0
    %113 = vmatpush.xpose.msra.mxu0 0.0
    %114 = vmatpush.xpose.msra.mxu0 0.0
    %115 = vmatpush.xpose.msra.mxu0 0.0
    %116 = vmatpush.xpose.msra.mxu0 0.0
    %117 = vmatpush.xpose.msra.mxu0 0.0
    %118 = vmatpush.xpose.msra.mxu0 0.0
    %119 = vmatpush.xpose.msra.mxu0 0.0
    %120 = vmatpush.xpose.msra.mxu0 0.0
    %121 = vmatpush.xpose.msra.mxu0 0.0
    %122 = vmatpush.xpose.msra.mxu0 %v105
    %123 = vmatmul.f32.gmra.mxu0 %v102
    %v124 = vpop.f32.mrf.mxu0
    %v125 = vadd.f32 0.0, %v124
    %126 = vdwg.mxu0
    %v127 = vstv %s69
    %v128 = vmul.f32 %v99, %v127
    %v129 = vmul.f32 %v125, %v127
    %v130 = vld [vmem:[#allocation8] sm:$0xff]
    %v131 = vld [vmem:[#allocation8 + $0x8] sm:$0xff]
    %vm132 = vcmask 64512
    %v133 = vsel %vm132, %v128, -inf
    %134 = vmax.xlane.f32.xlu0 %v133
    %v135 = vpop.xlane.xlu0 %134
    %v136 = vsel %vm132, %v129, -inf
    %137 = vmax.xlane.f32.xlu0 %v136
    %v138 = vpop.xlane.xlu0 %137
    %v139 = vsub.f32 %v128, %v135
    %v140 = vsub.f32 %v129, %v138
    %v141 = vmul.f32 %v139, 1.442695
    %v142 = vpow.pop %v141
    %v143 = vmul.f32 %v140, 1.442695
    %v144 = vpow.pop %v143
    %v145 = vsel %vm132, %v142, 0.0
    %146 = vadd.xlane.f32.xlu0 %v145
    %v147 = vpop.xlane.xlu0 %146
    %v148 = vsel %vm132, %v144, 0.0
    %149 = vadd.xlane.f32.xlu0 %v148
    %v150 = vpop.xlane.xlu0 %149
    %v151 = vrcp.pop %v147
    %v152 = vmul.f32 %v147, %v151
    %v153 = vsub.f32 1.0, %v152
    %v154 = vmul.f32 %v151, %v153
    %v155 = vadd.f32 %v151, %v154
    %vm156 = vweird.f32 %v147
    %vm157 = vweird.f32 %v151
    %vm158 = vmor %vm156, %vm157
    %v159 = vsel %vm158, %v151, %v155
    %v160 = vand.u32 2147483647, %v147
    %vm161 = vcmp.eq.f32.partialorder %v160, 8.507059e+37
    %v162 = vand.u32 %v147, 2147483648
    %v163 = vor.u32 1.1754944e-38, %v162
    %v164 = vsel %vm161, %v163, %v159
    %v165 = vrcp.pop %v150
    %v166 = vmul.f32 %v150, %v165
    %v167 = vsub.f32 1.0, %v166
    %v168 = vmul.f32 %v165, %v167
    %v169 = vadd.f32 %v165, %v168
    %vm170 = vweird.f32 %v150
    %vm171 = vweird.f32 %v165
    %vm172 = vmor %vm170, %vm171
    %v173 = vsel %vm172, %v165, %v169
    %v174 = vand.u32 2147483647, %v150
    %vm175 = vcmp.eq.f32.partialorder %v174, 8.507059e+37
    %v176 = vand.u32 %v150, 2147483648
    %v177 = vor.u32 1.1754944e-38, %v176
    %v178 = vsel %vm175, %v177, %v173
    %v179 = vmul.f32 %v142, %v164
    %v180 = vmul.f32 %v144, %v178
    %181 = vst.msk [vmem:[#allocation10] sm:$0xff] %vm132, %v179
    %182 = vst.msk [vmem:[#allocation10 + $0x8] sm:$0xff] %vm132, %v180
    %v184 = vsel %vm132, %v179, 0
    %186 = vmatpush.msra.mxu0 0.0
    %187 = vmatpush.msra.mxu0 0.0
    %188 = vmatpush.msra.mxu0 0.0
    %189 = vmatpush.msra.mxu0 0.0
    %190 = vmatpush.msra.mxu0 0.0
    %191 = vmatpush.msra.mxu0 0.0
    %192 = vmatpush.msra.mxu0 0.0
    %193 = vmatpush.msra.mxu0 0.0
    %194 = vmatpush.msra.mxu0 0.0
    %195 = vmatpush.msra.mxu0 0.0
    %196 = vmatpush.msra.mxu0 0.0
    %197 = vmatpush.msra.mxu0 0.0
    %198 = vmatpush.msra.mxu0 0.0
    %199 = vmatpush.msra.mxu0 0.0
    %200 = vmatpush.msra.mxu0 0.0
    %201 = vmatpush.msra.mxu0 %v130
    %202 = vmatmul.f32.gmra.mxu0 %v184
    %v203 = vpop.f32.mrf.mxu0
    %v204 = vadd.f32 0.0, %v203
    %205 = vdwg.mxu0
    %v207 = vsel %vm132, %v180, 0
    %209 = vmatpush.msra.mxu0 0.0
    %210 = vmatpush.msra.mxu0 0.0
    %211 = vmatpush.msra.mxu0 0.0
    %212 = vmatpush.msra.mxu0 0.0
    %213 = vmatpush.msra.mxu0 0.0
    %214 = vmatpush.msra.mxu0 0.0
    %215 = vmatpush.msra.mxu0 0.0
    %216 = vmatpush.msra.mxu0 0.0
    %217 = vmatpush.msra.mxu0 0.0
    %218 = vmatpush.msra.mxu0 0.0
    %219 = vmatpush.msra.mxu0 0.0
    %220 = vmatpush.msra.mxu0 0.0
    %221 = vmatpush.msra.mxu0 0.0
    %222 = vmatpush.msra.mxu0 0.0
    %223 = vmatpush.msra.mxu0 0.0
    %224 = vmatpush.msra.mxu0 %v131
    %225 = vmatmul.f32.gmra.mxu0 %v207
    %v226 = vpop.f32.mrf.mxu0
    %v227 = vadd.f32 0.0, %v226
    %228 = vdwg.mxu0
    %229 = vst.msk [vmem:[#allocation9] sm:$0xff] %vm74, %v204
    %230 = vst.msk [vmem:[#allocation9 + $0x8] sm:$0xff] %vm74, %v227
    // Predicated region
    $region30: #{scaled_dot_product_attention.1} parent=1 // pred_check
      _
    $region31: #{scaled_dot_product_attention.1} parent=1 // pred_check_branch
      %232 = sbr.rel (0) target = $region33
    $region32: #{scaled_dot_product_attention.1} parent=1 // pred_region
      %234 = vsyncadd [#allocation5], 0
      %s235 = sshll.u32 [#allocation9], 4
      %s236 = int_to_ptr.vmem [resolvable:$true] %s235
      %s237 = sshll.u32 %s4, 4
      %s238 = int_to_ptr.hbm [resolvable:$true] %s237
      %243 = dma.vmem_to_hbm [thread:$0]  %s236, 256, %s238, [#allocation5], 128, 128, 8
    $region33: #{scaled_dot_product_attention.1} parent=1 // pred_fallthru
      _
    // Predicated region
    $region34: #{scaled_dot_product_attention.1} parent=1 // pred_check
      _
    $region35: #{scaled_dot_product_attention.1} parent=1 // pred_check_branch
      %245 = sbr.rel (0) target = $region37
    $region36: #{scaled_dot_product_attention.1} parent=1 // pred_region
      %247 = vsyncadd [#allocation11], 0
      %s248 = sshll.u32 [#allocation10], 4
      %s249 = int_to_ptr.vmem [resolvable:$true] %s248
      %s250 = sshll.u32 %s5, 4
      %s251 = int_to_ptr.hbm [resolvable:$true] %s250
      %256 = dma.vmem_to_hbm [thread:$0]  %s249, 256, %s251, [#allocation11], 128, 128, 8
    $region37: #{scaled_dot_product_attention.1} parent=1 // pred_fallthru
      _
    // Predicated region
    $region38: #{scaled_dot_product_attention.1} parent=1 // pred_check
      _
    $region39: #{scaled_dot_product_attention.1} parent=1 // pred_check_branch
      %258 = sbr.rel (0) target = $region41
    $region40: #{scaled_dot_product_attention.1} parent=1 // pred_region
      %260 = dma.done [#allocation5], 256
    $region41: #{scaled_dot_product_attention.1} parent=1 // pred_fallthru
      _
    // Predicated region
    $region42: #{scaled_dot_product_attention.1} parent=1 // pred_check
      _
    $region43: #{scaled_dot_product_attention.1} parent=1 // pred_check_branch
      %262 = sbr.rel (0) target = $region45
    $region44: #{scaled_dot_product_attention.1} parent=1 // pred_region
      %264 = dma.done [#allocation11], 256
    $region45: #{scaled_dot_product_attention.1} parent=1 // pred_fallthru
      _
    %265 = vsyncpa [#allocation4], 1
    %266 = vsyncpa [#allocation7], 1
    %267 = vsyncpa [#allocation5], 1
    %268 = vsyncpa [#allocation11], 1

</llo_original>
